<compile_context>
chip_gen: v6e
topology: v6e:2x2x1
jax: 0.10.0
libtpu: 0.0.40
codegen_flags: <defaults>
</compile_context>

<pallas_src>
import jax
import jax.numpy as jnp
from jax import lax
from jax.experimental import pallas as pl
from jax.experimental.pallas import tpu as pltpu


def _intra_attention_kernel(x_ref, mask_ref, w1_ref, b1_ref, w2_ref, b2_ref,
                            out_ref, hpad_ref):
    """One batch-group per grid step.

    x_ref    : (H+2, L)    VMEM  -- zero-ring padded images packed along lanes
                                    (lane l = img*(W+2) + padded column u)
    mask_ref : (1, L)      VMEM  -- 1.0 on interior image columns, 0.0 on the
                                    per-image pad/seam columns and dead lanes
    w1_ref   : (27,)       SMEM  -- conv1 weight (out_c, ky, kx) flat, BN1 folded
    b1_ref   : (3,)        SMEM
    w2_ref   : (27,)       SMEM  -- conv2 weight (in_c, ky, kx) flat, BN2 folded
    b2_ref   : (1,)        SMEM
    out_ref  : (H, L)      VMEM  -- sigmoid attention map (padded columns junk,
                                    discarded by the host)
    hpad_ref : (3, H+2, L) VMEM scratch -- zero-bordered ReLU feature maps
    """
    H, L = out_ref.shape
    cdt = hpad_ref.dtype                       # compute dtype for the conv MACs

    lane_mask = mask_ref[...]                  # (1, L), broadcasts over rows

    # Zero only the top/bottom halo rows of the ReLU scratch (interiors and the
    # pad columns are fully rewritten / masked below).
    zrow = jnp.zeros((3, 1, L), cdt)
    hpad_ref[:, 0:1, :] = zrow
    hpad_ref[:, H + 1:H + 2, :] = zrow

    # ---- conv1 (1 -> 3 ch, 3x3, pad 1) + folded BN1 + ReLU ------------------
    # Tap-outer / channel-inner: one shifted tap live at a time, 3 accumulators.
    acc1 = [None, None, None]
    for dy in range(3):
        xs = x_ref[dy:dy + H, :].astype(cdt)                  # (H, L) row tap
        for dx in range(3):
            d = dx - 1
            # lane shift via XLU roll; wrap only hits per-image pad columns
            tap = xs if d == 0 else pltpu.roll(xs, (-d) % L, axis=1)
            for c in range(3):
                term = w1_ref[9 * c + 3 * dy + dx].astype(cdt) * tap
                acc1[c] = term if acc1[c] is None else acc1[c] + term
    for c in range(3):
        h = jnp.maximum(acc1[c].astype(jnp.float32) + b1_ref[c], 0.0) * lane_mask
        hpad_ref[c, 1:H + 1, :] = h.astype(cdt)

    # ---- conv2 (3 -> 1 ch, 3x3, pad 1) + folded BN2 + sigmoid ---------------
    acc_a = None
    acc_b = None
    t = 0
    for c in range(3):
        for dy in range(3):
            hs = hpad_ref[c, dy:dy + H, :]                    # (H, L)
            for dx in range(3):
                d = dx - 1
                tap = hs if d == 0 else pltpu.roll(hs, (-d) % L, axis=1)
                term = w2_ref[9 * c + 3 * dy + dx].astype(cdt) * tap
                if t % 2 == 0:                 # two chains for VALU ILP
                    acc_a = term if acc_a is None else acc_a + term
                else:
                    acc_b = term if acc_b is None else acc_b + term
                t += 1
    z = (acc_a + acc_b).astype(jnp.float32) + b2_ref[0]
    # sigmoid via tanh -> EUP slot instead of a VALU divide sequence
    out_ref[...] = 0.5 * (jnp.tanh(0.5 * z) + 1.0)


def intra_attention_forward(x, params, identity=False,
                            compute_dtype=jnp.float32, lane_target=128):
    """x: (N, 1, H, W) float32 (NCHW, PyTorch convention)."""
    assert x.shape[1] == 1, "IntraAttention Module get 1 channel image"
    if identity:
        return x

    w1_flat, b1_eff, w2_flat, b2_eff = params  # BN-folded, flattened
    N, _, H, W = x.shape
    wp = W + 2

    # --- lane packing: nb images per block, lane width padded to mult. of 128
    nb = max(1, lane_target // wp)
    nb = min(nb, N)
    G = -(-N // nb)                     # ceil(N / nb)
    Npad = G * nb
    Lraw = nb * wp
    L = 128 * (-(-Lraw // 128))         # lane-dense, keeps rolls on aligned tiles

    # One fused host pass: pad batch -> Npad, 1-px zero ring on H/W, pack lanes.
    # (In a full AAA pipeline this packed layout would be kept across the three
    # IntraAttention branches instead of round-tripping NCHW each time.)
    x2 = jnp.pad(x[:, 0, :, :], ((0, Npad - N), (1, 1), (1, 1)))     # (Npad,H+2,W+2)
    xp = (x2.reshape(G, nb, H + 2, wp)
             .transpose(0, 2, 1, 3)
             .reshape(G, H + 2, Lraw))
    xp = jnp.pad(xp, ((0, 0), (0, 0), (0, L - Lraw)))                # (G,H+2,L)

    # Per-lane validity mask: interior image columns only (seams + dead lanes 0).
    col = jnp.arange(Lraw, dtype=jnp.int32) % wp
    m = ((col >= 1) & (col <= W)).astype(jnp.float32)
    lane_mask = jnp.pad(m, (0, L - Lraw))[None, :]                   # (1, L)

    itemsize = jnp.dtype(compute_dtype).itemsize
    est = (2 * 4 * L * ((H + 2) + H)        # double-buffered in/out blocks
           + itemsize * 3 * (H + 2) * L     # hpad scratch
           + 4 * L)                         # mask
    vmem_limit = int(min(100 * (1 << 20), max(32 * (1 << 20), 4 * est)))

    out_packed = pl.pallas_call(
        _intra_attention_kernel,
        out_shape=jax.ShapeDtypeStruct((G, H, L), jnp.float32),
        grid_spec=pltpu.PrefetchScalarGridSpec(
            num_scalar_prefetch=0,
            grid=(G,),
            in_specs=[
                pl.BlockSpec((None, H + 2, L), lambda g: (g, 0, 0)),
                pl.BlockSpec((1, L), lambda g: (0, 0)),
                pl.BlockSpec(memory_space=pltpu.MemorySpace.SMEM),
                pl.BlockSpec(memory_space=pltpu.MemorySpace.SMEM),
                pl.BlockSpec(memory_space=pltpu.MemorySpace.SMEM),
                pl.BlockSpec(memory_space=pltpu.MemorySpace.SMEM),
            ],
            out_specs=pl.BlockSpec((None, H, L), lambda g: (g, 0, 0)),
            scratch_shapes=[pltpu.VMEM((3, H + 2, L), compute_dtype)],
        ),
        compiler_params=pltpu.CompilerParams(
            dimension_semantics=("parallel",),
            vmem_limit_bytes=vmem_limit),
    )(xp, lane_mask, w1_flat, b1_eff, w2_flat, b2_eff)

    # Unpack lanes -> (N, 1, H, W); discards per-image pad columns, dead lanes
    # and any padded (garbage) batch entries. Fused by XLA with the consumer.
    out = (out_packed[:, :, :Lraw]
           .reshape(G, H, nb, wp)
           .transpose(0, 2, 1, 3)
           .reshape(Npad, H, wp)[:N, :, 1:W + 1])
    return out[:, None, :, :]


def make_params(key):
    """Deterministically build conv + BN params and fold BN (eval mode)."""
    ks = jax.random.split(key, 8)
    eps = 1e-5

    W1 = jax.random.normal(ks[0], (3, 1, 3, 3), jnp.float32) * 0.3
    cb1 = jax.random.normal(ks[1], (3,), jnp.float32) * 0.1
    W2 = jax.random.normal(ks[2], (1, 3, 3, 3), jnp.float32) * 0.3
    cb2 = jax.random.normal(ks[3], (1,), jnp.float32) * 0.1

    g1 = 1.0 + 0.1 * jax.random.normal(ks[4], (3,), jnp.float32)
    beta1 = 0.05 * jax.random.normal(ks[5], (3,), jnp.float32)
    m1 = 0.02 * jnp.arange(3, dtype=jnp.float32)
    v1 = jnp.ones((3,), jnp.float32) * 1.1

    g2 = jnp.ones((1,), jnp.float32) * 0.9
    beta2 = jnp.array([0.03], jnp.float32)
    m2 = jnp.array([0.01], jnp.float32)
    v2 = jnp.array([1.2], jnp.float32)

    s1 = g1 / jnp.sqrt(v1 + eps)
    w1_eff = W1 * s1[:, None, None, None]              # (3,1,3,3)
    b1_eff = (cb1 - m1) * s1 + beta1                   # (3,)

    s2 = g2 / jnp.sqrt(v2 + eps)
    w2_eff = W2 * s2[:, None, None, None]              # (1,3,3,3)
    b2_eff = (cb2 - m2) * s2 + beta2                   # (1,)

    kernel_params = (
        w1_eff[:, 0, :, :].reshape(-1),    # (27,) (out_c, ky, kx) flat
        b1_eff,                            # (3,)
        w2_eff[0, :, :, :].reshape(-1),    # (27,) (in_c, ky, kx) flat
        b2_eff,                            # (1,)
    )
    ref_params = (w1_eff, b1_eff, w2_eff, b2_eff)
    return kernel_params, ref_params


def jax_reference(x, ref_params):
    w1, b1, w2, b2 = ref_params
    dn = ("NCHW", "OIHW", "NCHW")
    y = lax.conv_general_dilated(x, w1, (1, 1), "SAME", dimension_numbers=dn)
    y = jnp.maximum(y + b1.reshape(1, 3, 1, 1), 0.0)
    y = lax.conv_general_dilated(y, w2, (1, 1), "SAME", dimension_numbers=dn)
    y = y + b2.reshape(1, 1, 1, 1)
    return jax.nn.sigmoid(y)


if __name__ == "__main__":
    key = jax.random.PRNGKey(0)
    kx, kp = jax.random.split(key)
    kernel_params, ref_params = make_params(kp)

    # small test shape consistent with the module (1-channel images)
    N, H, W = 2, 16, 16
    x = jax.random.normal(kx, (N, 1, H, W), jnp.float32)

    out = jax.block_until_ready(intra_attention_forward(x, kernel_params))
    ref = jax_reference(x, ref_params)
    assert out.shape == (N, 1, H, W)
    assert jnp.allclose(out, ref, rtol=1e-4, atol=2e-5), (
        f"max abs err {jnp.max(jnp.abs(out - ref))}")

    # multi-group / ragged-batch case (exercises lane packing + grid > 1)
    N2 = 9
    x2 = jax.random.normal(jax.random.PRNGKey(7), (N2, 1, H, W), jnp.float32)
    out2 = jax.block_until_ready(intra_attention_forward(x2, kernel_params))
    ref2 = jax_reference(x2, ref_params)
    assert out2.shape == (N2, 1, H, W)
    assert jnp.allclose(out2, ref2, rtol=1e-4, atol=2e-5), (
        f"max abs err {jnp.max(jnp.abs(out2 - ref2))}")

    # identity path
    out_id = jax.block_until_ready(
        intra_attention_forward(x, kernel_params, identity=True))
    assert jnp.array_equal(out_id, x)

    print("KERNEL_OK")
</pallas_src>

<mosaic_0001>
module attributes {stable_mosaic.version = 11 : i64} {
  func.func @_intra_attention_kernel(%arg0: i32, %arg1: memref<1x18x128xf32, #tpu.memory_space<vmem>>, %arg2: memref<1x128xf32, #tpu.memory_space<vmem>>, %arg3: memref<27xf32, #tpu.memory_space<smem>>, %arg4: memref<3xf32, #tpu.memory_space<smem>>, %arg5: memref<27xf32, #tpu.memory_space<smem>>, %arg6: memref<1xf32, #tpu.memory_space<smem>>, %arg7: memref<1x16x128xf32, #tpu.memory_space<vmem>>, %arg8: memref<3x18x128xf32, #tpu.memory_space<vmem>>) attributes {dimension_semantics = [#tpu.dimension_semantics<parallel>], iteration_bounds = array<i64: 1>, scalar_prefetch = 0 : i64, scratch_operands = 1 : i64, tpu.core_type = #tpu.core_type<tc>, window_params = [{transform_indices = @transform_0, window_bounds = array<i64: 1, 18, 128>}, {pipeline_mode = #tpu.pipeline_mode<synchronous>, transform_indices = @transform_1, window_bounds = array<i64: 1, 128>}, {transform_indices = @transform_2, window_bounds = array<i64: 27>}, {transform_indices = @transform_3, window_bounds = array<i64: 3>}, {transform_indices = @transform_4, window_bounds = array<i64: 27>}, {transform_indices = @transform_5, window_bounds = array<i64: 1>}, {transform_indices = @transform_6, window_bounds = array<i64: 1, 16, 128>}]} {
    %c0 = arith.constant 0 : index
    %c0_0 = arith.constant 0 : index
    %0 = vector.load %arg2[%c0, %c0_0] : memref<1x128xf32, #tpu.memory_space<vmem>>, vector<1x128xf32>
    %cst = arith.constant 0.000000e+00 : f32
    %1 = vector.broadcast %cst : f32 to vector<3x1x128xf32>
    %c0_1 = arith.constant 0 : index
    %c0_2 = arith.constant 0 : index
    %c0_3 = arith.constant 0 : index
    %2 = vector.load %arg8[%c0_1, %c0_2, %c0_3] : memref<3x18x128xf32, #tpu.memory_space<vmem>>, vector<3x1x128xf32>
    tpu.vector_store %arg8[%c0_1, %c0_2, %c0_3], %1 {strides = array<i32>} : memref<3x18x128xf32, #tpu.memory_space<vmem>>, vector<3x1x128xf32>,
    %c0_4 = arith.constant 0 : index
    %c17 = arith.constant 17 : index
    %c0_5 = arith.constant 0 : index
    %3 = vector.load %arg8[%c0_4, %c17, %c0_5] : memref<3x18x128xf32, #tpu.memory_space<vmem>>, vector<3x1x128xf32>
    tpu.vector_store %arg8[%c0_4, %c17, %c0_5], %1 {strides = array<i32>} : memref<3x18x128xf32, #tpu.memory_space<vmem>>, vector<3x1x128xf32>,
    %c0_6 = arith.constant 0 : index
    %c0_7 = arith.constant 0 : index
    %c0_8 = arith.constant 0 : index
    %4 = vector.load %arg1[%c0_6, %c0_7, %c0_8] : memref<1x18x128xf32, #tpu.memory_space<vmem>>, vector<1x16x128xf32>
    %5 = vector.shape_cast %4 : vector<1x16x128xf32> to vector<16x128xf32>
    %c1_i32 = arith.constant 1 : i32
    %6 = tpu.dynamic_rotate %5 by %c1_i32 dim 1 : vector<16x128xf32>, i32 -> vector<16x128xf32>
    %c0_9 = arith.constant 0 : index
    %7 = memref.load %arg3[%c0_9] : memref<27xf32, #tpu.memory_space<smem>>
    %8 = vector.broadcast %7 : f32 to vector<16x128xf32>
    %9 = arith.mulf %8, %6 : vector<16x128xf32>
    %c9 = arith.constant 9 : index
    %10 = memref.load %arg3[%c9] : memref<27xf32, #tpu.memory_space<smem>>
    %11 = vector.broadcast %10 : f32 to vector<16x128xf32>
    %12 = arith.mulf %11, %6 : vector<16x128xf32>
    %c18 = arith.constant 18 : index
    %13 = memref.load %arg3[%c18] : memref<27xf32, #tpu.memory_space<smem>>
    %14 = vector.broadcast %13 : f32 to vector<16x128xf32>
    %15 = arith.mulf %14, %6 : vector<16x128xf32>
    %c1 = arith.constant 1 : index
    %16 = memref.load %arg3[%c1] : memref<27xf32, #tpu.memory_space<smem>>
    %17 = vector.broadcast %16 : f32 to vector<16x128xf32>
    %18 = arith.mulf %17, %5 : vector<16x128xf32>
    %19 = arith.addf %9, %18 : vector<16x128xf32>
    %c10 = arith.constant 10 : index
    %20 = memref.load %arg3[%c10] : memref<27xf32, #tpu.memory_space<smem>>
    %21 = vector.broadcast %20 : f32 to vector<16x128xf32>
    %22 = arith.mulf %21, %5 : vector<16x128xf32>
    %23 = arith.addf %12, %22 : vector<16x128xf32>
    %c19 = arith.constant 19 : index
    %24 = memref.load %arg3[%c19] : memref<27xf32, #tpu.memory_space<smem>>
    %25 = vector.broadcast %24 : f32 to vector<16x128xf32>
    %26 = arith.mulf %25, %5 : vector<16x128xf32>
    %27 = arith.addf %15, %26 : vector<16x128xf32>
    %c127_i32 = arith.constant 127 : i32
    %28 = tpu.dynamic_rotate %5 by %c127_i32 dim 1 : vector<16x128xf32>, i32 -> vector<16x128xf32>
    %c2 = arith.constant 2 : index
    %29 = memref.load %arg3[%c2] : memref<27xf32, #tpu.memory_space<smem>>
    %30 = vector.broadcast %29 : f32 to vector<16x128xf32>
    %31 = arith.mulf %30, %28 : vector<16x128xf32>
    %32 = arith.addf %19, %31 : vector<16x128xf32>
    %c11 = arith.constant 11 : index
    %33 = memref.load %arg3[%c11] : memref<27xf32, #tpu.memory_space<smem>>
    %34 = vector.broadcast %33 : f32 to vector<16x128xf32>
    %35 = arith.mulf %34, %28 : vector<16x128xf32>
    %36 = arith.addf %23, %35 : vector<16x128xf32>
    %c20 = arith.constant 20 : index
    %37 = memref.load %arg3[%c20] : memref<27xf32, #tpu.memory_space<smem>>
    %38 = vector.broadcast %37 : f32 to vector<16x128xf32>
    %39 = arith.mulf %38, %28 : vector<16x128xf32>
    %40 = arith.addf %27, %39 : vector<16x128xf32>
    %c0_10 = arith.constant 0 : index
    %c1_11 = arith.constant 1 : index
    %c0_12 = arith.constant 0 : index
    %41 = vector.load %arg1[%c0_10, %c1_11, %c0_12] : memref<1x18x128xf32, #tpu.memory_space<vmem>>, vector<1x16x128xf32>
    %42 = vector.shape_cast %41 : vector<1x16x128xf32> to vector<16x128xf32>
    %c1_i32_13 = arith.constant 1 : i32
    %43 = tpu.dynamic_rotate %42 by %c1_i32_13 dim 1 : vector<16x128xf32>, i32 -> vector<16x128xf32>
    %c3 = arith.constant 3 : index
    %44 = memref.load %arg3[%c3] : memref<27xf32, #tpu.memory_space<smem>>
    %45 = vector.broadcast %44 : f32 to vector<16x128xf32>
    %46 = arith.mulf %45, %43 : vector<16x128xf32>
    %47 = arith.addf %32, %46 : vector<16x128xf32>
    %c12 = arith.constant 12 : index
    %48 = memref.load %arg3[%c12] : memref<27xf32, #tpu.memory_space<smem>>
    %49 = vector.broadcast %48 : f32 to vector<16x128xf32>
    %50 = arith.mulf %49, %43 : vector<16x128xf32>
    %51 = arith.addf %36, %50 : vector<16x128xf32>
    %c21 = arith.constant 21 : index
    %52 = memref.load %arg3[%c21] : memref<27xf32, #tpu.memory_space<smem>>
    %53 = vector.broadcast %52 : f32 to vector<16x128xf32>
    %54 = arith.mulf %53, %43 : vector<16x128xf32>
    %55 = arith.addf %40, %54 : vector<16x128xf32>
    %c4 = arith.constant 4 : index
    %56 = memref.load %arg3[%c4] : memref<27xf32, #tpu.memory_space<smem>>
    %57 = vector.broadcast %56 : f32 to vector<16x128xf32>
    %58 = arith.mulf %57, %42 : vector<16x128xf32>
    %59 = arith.addf %47, %58 : vector<16x128xf32>
    %c13 = arith.constant 13 : index
    %60 = memref.load %arg3[%c13] : memref<27xf32, #tpu.memory_space<smem>>
    %61 = vector.broadcast %60 : f32 to vector<16x128xf32>
    %62 = arith.mulf %61, %42 : vector<16x128xf32>
    %63 = arith.addf %51, %62 : vector<16x128xf32>
    %c22 = arith.constant 22 : index
    %64 = memref.load %arg3[%c22] : memref<27xf32, #tpu.memory_space<smem>>
    %65 = vector.broadcast %64 : f32 to vector<16x128xf32>
    %66 = arith.mulf %65, %42 : vector<16x128xf32>
    %67 = arith.addf %55, %66 : vector<16x128xf32>
    %c127_i32_14 = arith.constant 127 : i32
    %68 = tpu.dynamic_rotate %42 by %c127_i32_14 dim 1 : vector<16x128xf32>, i32 -> vector<16x128xf32>
    %c5 = arith.constant 5 : index
    %69 = memref.load %arg3[%c5] : memref<27xf32, #tpu.memory_space<smem>>
    %70 = vector.broadcast %69 : f32 to vector<16x128xf32>
    %71 = arith.mulf %70, %68 : vector<16x128xf32>
    %72 = arith.addf %59, %71 : vector<16x128xf32>
    %c14 = arith.constant 14 : index
    %73 = memref.load %arg3[%c14] : memref<27xf32, #tpu.memory_space<smem>>
    %74 = vector.broadcast %73 : f32 to vector<16x128xf32>
    %75 = arith.mulf %74, %68 : vector<16x128xf32>
    %76 = arith.addf %63, %75 : vector<16x128xf32>
    %c23 = arith.constant 23 : index
    %77 = memref.load %arg3[%c23] : memref<27xf32, #tpu.memory_space<smem>>
    %78 = vector.broadcast %77 : f32 to vector<16x128xf32>
    %79 = arith.mulf %78, %68 : vector<16x128xf32>
    %80 = arith.addf %67, %79 : vector<16x128xf32>
    %c0_15 = arith.constant 0 : index
    %c2_16 = arith.constant 2 : index
    %c0_17 = arith.constant 0 : index
    %81 = vector.load %arg1[%c0_15, %c2_16, %c0_17] : memref<1x18x128xf32, #tpu.memory_space<vmem>>, vector<1x16x128xf32>
    %82 = vector.shape_cast %81 : vector<1x16x128xf32> to vector<16x128xf32>
    %c1_i32_18 = arith.constant 1 : i32
    %83 = tpu.dynamic_rotate %82 by %c1_i32_18 dim 1 : vector<16x128xf32>, i32 -> vector<16x128xf32>
    %c6 = arith.constant 6 : index
    %84 = memref.load %arg3[%c6] : memref<27xf32, #tpu.memory_space<smem>>
    %85 = vector.broadcast %84 : f32 to vector<16x128xf32>
    %86 = arith.mulf %85, %83 : vector<16x128xf32>
    %87 = arith.addf %72, %86 : vector<16x128xf32>
    %c15 = arith.constant 15 : index
    %88 = memref.load %arg3[%c15] : memref<27xf32, #tpu.memory_space<smem>>
    %89 = vector.broadcast %88 : f32 to vector<16x128xf32>
    %90 = arith.mulf %89, %83 : vector<16x128xf32>
    %91 = arith.addf %76, %90 : vector<16x128xf32>
    %c24 = arith.constant 24 : index
    %92 = memref.load %arg3[%c24] : memref<27xf32, #tpu.memory_space<smem>>
    %93 = vector.broadcast %92 : f32 to vector<16x128xf32>
    %94 = arith.mulf %93, %83 : vector<16x128xf32>
    %95 = arith.addf %80, %94 : vector<16x128xf32>
    %c7 = arith.constant 7 : index
    %96 = memref.load %arg3[%c7] : memref<27xf32, #tpu.memory_space<smem>>
    %97 = vector.broadcast %96 : f32 to vector<16x128xf32>
    %98 = arith.mulf %97, %82 : vector<16x128xf32>
    %99 = arith.addf %87, %98 : vector<16x128xf32>
    %c16 = arith.constant 16 : index
    %100 = memref.load %arg3[%c16] : memref<27xf32, #tpu.memory_space<smem>>
    %101 = vector.broadcast %100 : f32 to vector<16x128xf32>
    %102 = arith.mulf %101, %82 : vector<16x128xf32>
    %103 = arith.addf %91, %102 : vector<16x128xf32>
    %c25 = arith.constant 25 : index
    %104 = memref.load %arg3[%c25] : memref<27xf32, #tpu.memory_space<smem>>
    %105 = vector.broadcast %104 : f32 to vector<16x128xf32>
    %106 = arith.mulf %105, %82 : vector<16x128xf32>
    %107 = arith.addf %95, %106 : vector<16x128xf32>
    %c127_i32_19 = arith.constant 127 : i32
    %108 = tpu.dynamic_rotate %82 by %c127_i32_19 dim 1 : vector<16x128xf32>, i32 -> vector<16x128xf32>
    %c8 = arith.constant 8 : index
    %109 = memref.load %arg3[%c8] : memref<27xf32, #tpu.memory_space<smem>>
    %110 = vector.broadcast %109 : f32 to vector<16x128xf32>
    %111 = arith.mulf %110, %108 : vector<16x128xf32>
    %112 = arith.addf %99, %111 : vector<16x128xf32>
    %c17_20 = arith.constant 17 : index
    %113 = memref.load %arg3[%c17_20] : memref<27xf32, #tpu.memory_space<smem>>
    %114 = vector.broadcast %113 : f32 to vector<16x128xf32>
    %115 = arith.mulf %114, %108 : vector<16x128xf32>
    %116 = arith.addf %103, %115 : vector<16x128xf32>
    %c26 = arith.constant 26 : index
    %117 = memref.load %arg3[%c26] : memref<27xf32, #tpu.memory_space<smem>>
    %118 = vector.broadcast %117 : f32 to vector<16x128xf32>
    %119 = arith.mulf %118, %108 : vector<16x128xf32>
    %120 = arith.addf %107, %119 : vector<16x128xf32>
    %c0_21 = arith.constant 0 : index
    %121 = memref.load %arg4[%c0_21] : memref<3xf32, #tpu.memory_space<smem>>
    %122 = vector.broadcast %121 : f32 to vector<16x128xf32>
    %123 = arith.addf %112, %122 : vector<16x128xf32>
    %cst_22 = arith.constant 0.000000e+00 : f32
    %124 = vector.broadcast %cst_22 : f32 to vector<16x128xf32>
    %125 = arith.maximumf %123, %124 : vector<16x128xf32>
    %126 = vector.broadcast %0 : vector<1x128xf32> to vector<16x128xf32>
    %127 = arith.mulf %125, %126 : vector<16x128xf32>
    %c0_23 = arith.constant 0 : index
    %c1_24 = arith.constant 1 : index
    %c0_25 = arith.constant 0 : index
    %128 = vector.load %arg8[%c0_23, %c1_24, %c0_25] : memref<3x18x128xf32, #tpu.memory_space<vmem>>, vector<1x16x128xf32>
    %129 = vector.shape_cast %128 : vector<1x16x128xf32> to vector<16x128xf32>
    %130 = vector.shape_cast %127 : vector<16x128xf32> to vector<1x16x128xf32>
    tpu.vector_store %arg8[%c0_23, %c1_24, %c0_25], %130 {strides = array<i32>} : memref<3x18x128xf32, #tpu.memory_space<vmem>>, vector<1x16x128xf32>,
    %c1_26 = arith.constant 1 : index
    %131 = memref.load %arg4[%c1_26] : memref<3xf32, #tpu.memory_space<smem>>
    %132 = vector.broadcast %131 : f32 to vector<16x128xf32>
    %133 = arith.addf %116, %132 : vector<16x128xf32>
    %cst_27 = arith.constant 0.000000e+00 : f32
    %134 = vector.broadcast %cst_27 : f32 to vector<16x128xf32>
    %135 = arith.maximumf %133, %134 : vector<16x128xf32>
    %136 = vector.broadcast %0 : vector<1x128xf32> to vector<16x128xf32>
    %137 = arith.mulf %135, %136 : vector<16x128xf32>
    %c1_28 = arith.constant 1 : index
    %c1_29 = arith.constant 1 : index
    %c0_30 = arith.constant 0 : index
    %138 = vector.load %arg8[%c1_28, %c1_29, %c0_30] : memref<3x18x128xf32, #tpu.memory_space<vmem>>, vector<1x16x128xf32>
    %139 = vector.shape_cast %138 : vector<1x16x128xf32> to vector<16x128xf32>
    %140 = vector.shape_cast %137 : vector<16x128xf32> to vector<1x16x128xf32>
    tpu.vector_store %arg8[%c1_28, %c1_29, %c0_30], %140 {strides = array<i32>} : memref<3x18x128xf32, #tpu.memory_space<vmem>>, vector<1x16x128xf32>,
    %c2_31 = arith.constant 2 : index
    %141 = memref.load %arg4[%c2_31] : memref<3xf32, #tpu.memory_space<smem>>
    %142 = vector.broadcast %141 : f32 to vector<16x128xf32>
    %143 = arith.addf %120, %142 : vector<16x128xf32>
    %cst_32 = arith.constant 0.000000e+00 : f32
    %144 = vector.broadcast %cst_32 : f32 to vector<16x128xf32>
    %145 = arith.maximumf %143, %144 : vector<16x128xf32>
    %146 = vector.broadcast %0 : vector<1x128xf32> to vector<16x128xf32>
    %147 = arith.mulf %145, %146 : vector<16x128xf32>
    %c2_33 = arith.constant 2 : index
    %c1_34 = arith.constant 1 : index
    %c0_35 = arith.constant 0 : index
    %148 = vector.load %arg8[%c2_33, %c1_34, %c0_35] : memref<3x18x128xf32, #tpu.memory_space<vmem>>, vector<1x16x128xf32>
    %149 = vector.shape_cast %148 : vector<1x16x128xf32> to vector<16x128xf32>
    %150 = vector.shape_cast %147 : vector<16x128xf32> to vector<1x16x128xf32>
    tpu.vector_store %arg8[%c2_33, %c1_34, %c0_35], %150 {strides = array<i32>} : memref<3x18x128xf32, #tpu.memory_space<vmem>>, vector<1x16x128xf32>,
    %c0_36 = arith.constant 0 : index
    %c0_37 = arith.constant 0 : index
    %c0_38 = arith.constant 0 : index
    %151 = vector.load %arg8[%c0_36, %c0_37, %c0_38] : memref<3x18x128xf32, #tpu.memory_space<vmem>>, vector<1x16x128xf32>
    %152 = vector.shape_cast %151 : vector<1x16x128xf32> to vector<16x128xf32>
    %c1_i32_39 = arith.constant 1 : i32
    %153 = tpu.dynamic_rotate %152 by %c1_i32_39 dim 1 : vector<16x128xf32>, i32 -> vector<16x128xf32>
    %c0_40 = arith.constant 0 : index
    %154 = memref.load %arg5[%c0_40] : memref<27xf32, #tpu.memory_space<smem>>
    %155 = vector.broadcast %154 : f32 to vector<16x128xf32>
    %156 = arith.mulf %155, %153 : vector<16x128xf32>
    %c1_41 = arith.constant 1 : index
    %157 = memref.load %arg5[%c1_41] : memref<27xf32, #tpu.memory_space<smem>>
    %158 = vector.broadcast %157 : f32 to vector<16x128xf32>
    %159 = arith.mulf %158, %152 : vector<16x128xf32>
    %c127_i32_42 = arith.constant 127 : i32
    %160 = tpu.dynamic_rotate %152 by %c127_i32_42 dim 1 : vector<16x128xf32>, i32 -> vector<16x128xf32>
    %c2_43 = arith.constant 2 : index
    %161 = memref.load %arg5[%c2_43] : memref<27xf32, #tpu.memory_space<smem>>
    %162 = vector.broadcast %161 : f32 to vector<16x128xf32>
    %163 = arith.mulf %162, %160 : vector<16x128xf32>
    %164 = arith.addf %156, %163 : vector<16x128xf32>
    %c0_44 = arith.constant 0 : index
    %c1_45 = arith.constant 1 : index
    %c0_46 = arith.constant 0 : index
    %165 = vector.load %arg8[%c0_44, %c1_45, %c0_46] : memref<3x18x128xf32, #tpu.memory_space<vmem>>, vector<1x16x128xf32>
    %166 = vector.shape_cast %165 : vector<1x16x128xf32> to vector<16x128xf32>
    %c1_i32_47 = arith.constant 1 : i32
    %167 = tpu.dynamic_rotate %166 by %c1_i32_47 dim 1 : vector<16x128xf32>, i32 -> vector<16x128xf32>
    %c3_48 = arith.constant 3 : index
    %168 = memref.load %arg5[%c3_48] : memref<27xf32, #tpu.memory_space<smem>>
    %169 = vector.broadcast %168 : f32 to vector<16x128xf32>
    %170 = arith.mulf %169, %167 : vector<16x128xf32>
    %171 = arith.addf %159, %170 : vector<16x128xf32>
    %c4_49 = arith.constant 4 : index
    %172 = memref.load %arg5[%c4_49] : memref<27xf32, #tpu.memory_space<smem>>
    %173 = vector.broadcast %172 : f32 to vector<16x128xf32>
    %174 = arith.mulf %173, %166 : vector<16x128xf32>
    %175 = arith.addf %164, %174 : vector<16x128xf32>
    %c127_i32_50 = arith.constant 127 : i32
    %176 = tpu.dynamic_rotate %166 by %c127_i32_50 dim 1 : vector<16x128xf32>, i32 -> vector<16x128xf32>
    %c5_51 = arith.constant 5 : index
    %177 = memref.load %arg5[%c5_51] : memref<27xf32, #tpu.memory_space<smem>>
    %178 = vector.broadcast %177 : f32 to vector<16x128xf32>
    %179 = arith.mulf %178, %176 : vector<16x128xf32>
    %180 = arith.addf %171, %179 : vector<16x128xf32>
    %c0_52 = arith.constant 0 : index
    %c2_53 = arith.constant 2 : index
    %c0_54 = arith.constant 0 : index
    %181 = vector.load %arg8[%c0_52, %c2_53, %c0_54] : memref<3x18x128xf32, #tpu.memory_space<vmem>>, vector<1x16x128xf32>
    %182 = vector.shape_cast %181 : vector<1x16x128xf32> to vector<16x128xf32>
    %c1_i32_55 = arith.constant 1 : i32
    %183 = tpu.dynamic_rotate %182 by %c1_i32_55 dim 1 : vector<16x128xf32>, i32 -> vector<16x128xf32>
    %c6_56 = arith.constant 6 : index
    %184 = memref.load %arg5[%c6_56] : memref<27xf32, #tpu.memory_space<smem>>
    %185 = vector.broadcast %184 : f32 to vector<16x128xf32>
    %186 = arith.mulf %185, %183 : vector<16x128xf32>
    %187 = arith.addf %175, %186 : vector<16x128xf32>
    %c7_57 = arith.constant 7 : index
    %188 = memref.load %arg5[%c7_57] : memref<27xf32, #tpu.memory_space<smem>>
    %189 = vector.broadcast %188 : f32 to vector<16x128xf32>
    %190 = arith.mulf %189, %182 : vector<16x128xf32>
    %191 = arith.addf %180, %190 : vector<16x128xf32>
    %c127_i32_58 = arith.constant 127 : i32
    %192 = tpu.dynamic_rotate %182 by %c127_i32_58 dim 1 : vector<16x128xf32>, i32 -> vector<16x128xf32>
    %c8_59 = arith.constant 8 : index
    %193 = memref.load %arg5[%c8_59] : memref<27xf32, #tpu.memory_space<smem>>
    %194 = vector.broadcast %193 : f32 to vector<16x128xf32>
    %195 = arith.mulf %194, %192 : vector<16x128xf32>
    %196 = arith.addf %187, %195 : vector<16x128xf32>
    %c1_60 = arith.constant 1 : index
    %c0_61 = arith.constant 0 : index
    %c0_62 = arith.constant 0 : index
    %197 = vector.load %arg8[%c1_60, %c0_61, %c0_62] : memref<3x18x128xf32, #tpu.memory_space<vmem>>, vector<1x16x128xf32>
    %198 = vector.shape_cast %197 : vector<1x16x128xf32> to vector<16x128xf32>
    %c1_i32_63 = arith.constant 1 : i32
    %199 = tpu.dynamic_rotate %198 by %c1_i32_63 dim 1 : vector<16x128xf32>, i32 -> vector<16x128xf32>
    %c9_64 = arith.constant 9 : index
    %200 = memref.load %arg5[%c9_64] : memref<27xf32, #tpu.memory_space<smem>>
    %201 = vector.broadcast %200 : f32 to vector<16x128xf32>
    %202 = arith.mulf %201, %199 : vector<16x128xf32>
    %203 = arith.addf %191, %202 : vector<16x128xf32>
    %c10_65 = arith.constant 10 : index
    %204 = memref.load %arg5[%c10_65] : memref<27xf32, #tpu.memory_space<smem>>
    %205 = vector.broadcast %204 : f32 to vector<16x128xf32>
    %206 = arith.mulf %205, %198 : vector<16x128xf32>
    %207 = arith.addf %196, %206 : vector<16x128xf32>
    %c127_i32_66 = arith.constant 127 : i32
    %208 = tpu.dynamic_rotate %198 by %c127_i32_66 dim 1 : vector<16x128xf32>, i32 -> vector<16x128xf32>
    %c11_67 = arith.constant 11 : index
    %209 = memref.load %arg5[%c11_67] : memref<27xf32, #tpu.memory_space<smem>>
    %210 = vector.broadcast %209 : f32 to vector<16x128xf32>
    %211 = arith.mulf %210, %208 : vector<16x128xf32>
    %212 = arith.addf %203, %211 : vector<16x128xf32>
    %c1_68 = arith.constant 1 : index
    %c1_69 = arith.constant 1 : index
    %c0_70 = arith.constant 0 : index
    %213 = vector.load %arg8[%c1_68, %c1_69, %c0_70] : memref<3x18x128xf32, #tpu.memory_space<vmem>>, vector<1x16x128xf32>
    %214 = vector.shape_cast %213 : vector<1x16x128xf32> to vector<16x128xf32>
    %c1_i32_71 = arith.constant 1 : i32
    %215 = tpu.dynamic_rotate %214 by %c1_i32_71 dim 1 : vector<16x128xf32>, i32 -> vector<16x128xf32>
    %c12_72 = arith.constant 12 : index
    %216 = memref.load %arg5[%c12_72] : memref<27xf32, #tpu.memory_space<smem>>
    %217 = vector.broadcast %216 : f32 to vector<16x128xf32>
    %218 = arith.mulf %217, %215 : vector<16x128xf32>
    %219 = arith.addf %207, %218 : vector<16x128xf32>
    %c13_73 = arith.constant 13 : index
    %220 = memref.load %arg5[%c13_73] : memref<27xf32, #tpu.memory_space<smem>>
    %221 = vector.broadcast %220 : f32 to vector<16x128xf32>
    %222 = arith.mulf %221, %214 : vector<16x128xf32>
    %223 = arith.addf %212, %222 : vector<16x128xf32>
    %c127_i32_74 = arith.constant 127 : i32
    %224 = tpu.dynamic_rotate %214 by %c127_i32_74 dim 1 : vector<16x128xf32>, i32 -> vector<16x128xf32>
    %c14_75 = arith.constant 14 : index
    %225 = memref.load %arg5[%c14_75] : memref<27xf32, #tpu.memory_space<smem>>
    %226 = vector.broadcast %225 : f32 to vector<16x128xf32>
    %227 = arith.mulf %226, %224 : vector<16x128xf32>
    %228 = arith.addf %219, %227 : vector<16x128xf32>
    %c1_76 = arith.constant 1 : index
    %c2_77 = arith.constant 2 : index
    %c0_78 = arith.constant 0 : index
    %229 = vector.load %arg8[%c1_76, %c2_77, %c0_78] : memref<3x18x128xf32, #tpu.memory_space<vmem>>, vector<1x16x128xf32>
    %230 = vector.shape_cast %229 : vector<1x16x128xf32> to vector<16x128xf32>
    %c1_i32_79 = arith.constant 1 : i32
    %231 = tpu.dynamic_rotate %230 by %c1_i32_79 dim 1 : vector<16x128xf32>, i32 -> vector<16x128xf32>
    %c15_80 = arith.constant 15 : index
    %232 = memref.load %arg5[%c15_80] : memref<27xf32, #tpu.memory_space<smem>>
    %233 = vector.broadcast %232 : f32 to vector<16x128xf32>
    %234 = arith.mulf %233, %231 : vector<16x128xf32>
    %235 = arith.addf %223, %234 : vector<16x128xf32>
    %c16_81 = arith.constant 16 : index
    %236 = memref.load %arg5[%c16_81] : memref<27xf32, #tpu.memory_space<smem>>
    %237 = vector.broadcast %236 : f32 to vector<16x128xf32>
    %238 = arith.mulf %237, %230 : vector<16x128xf32>
    %239 = arith.addf %228, %238 : vector<16x128xf32>
    %c127_i32_82 = arith.constant 127 : i32
    %240 = tpu.dynamic_rotate %230 by %c127_i32_82 dim 1 : vector<16x128xf32>, i32 -> vector<16x128xf32>
    %c17_83 = arith.constant 17 : index
    %241 = memref.load %arg5[%c17_83] : memref<27xf32, #tpu.memory_space<smem>>
    %242 = vector.broadcast %241 : f32 to vector<16x128xf32>
    %243 = arith.mulf %242, %240 : vector<16x128xf32>
    %244 = arith.addf %235, %243 : vector<16x128xf32>
    %c2_84 = arith.constant 2 : index
    %c0_85 = arith.constant 0 : index
    %c0_86 = arith.constant 0 : index
    %245 = vector.load %arg8[%c2_84, %c0_85, %c0_86] : memref<3x18x128xf32, #tpu.memory_space<vmem>>, vector<1x16x128xf32>
    %246 = vector.shape_cast %245 : vector<1x16x128xf32> to vector<16x128xf32>
    %c1_i32_87 = arith.constant 1 : i32
    %247 = tpu.dynamic_rotate %246 by %c1_i32_87 dim 1 : vector<16x128xf32>, i32 -> vector<16x128xf32>
    %c18_88 = arith.constant 18 : index
    %248 = memref.load %arg5[%c18_88] : memref<27xf32, #tpu.memory_space<smem>>
    %249 = vector.broadcast %248 : f32 to vector<16x128xf32>
    %250 = arith.mulf %249, %247 : vector<16x128xf32>
    %251 = arith.addf %239, %250 : vector<16x128xf32>
    %c19_89 = arith.constant 19 : index
    %252 = memref.load %arg5[%c19_89] : memref<27xf32, #tpu.memory_space<smem>>
    %253 = vector.broadcast %252 : f32 to vector<16x128xf32>
    %254 = arith.mulf %253, %246 : vector<16x128xf32>
    %255 = arith.addf %244, %254 : vector<16x128xf32>
    %c127_i32_90 = arith.constant 127 : i32
    %256 = tpu.dynamic_rotate %246 by %c127_i32_90 dim 1 : vector<16x128xf32>, i32 -> vector<16x128xf32>
    %c20_91 = arith.constant 20 : index
    %257 = memref.load %arg5[%c20_91] : memref<27xf32, #tpu.memory_space<smem>>
    %258 = vector.broadcast %257 : f32 to vector<16x128xf32>
    %259 = arith.mulf %258, %256 : vector<16x128xf32>
    %260 = arith.addf %251, %259 : vector<16x128xf32>
    %c2_92 = arith.constant 2 : index
    %c1_93 = arith.constant 1 : index
    %c0_94 = arith.constant 0 : index
    %261 = vector.load %arg8[%c2_92, %c1_93, %c0_94] : memref<3x18x128xf32, #tpu.memory_space<vmem>>, vector<1x16x128xf32>
    %262 = vector.shape_cast %261 : vector<1x16x128xf32> to vector<16x128xf32>
    %c1_i32_95 = arith.constant 1 : i32
    %263 = tpu.dynamic_rotate %262 by %c1_i32_95 dim 1 : vector<16x128xf32>, i32 -> vector<16x128xf32>
    %c21_96 = arith.constant 21 : index
    %264 = memref.load %arg5[%c21_96] : memref<27xf32, #tpu.memory_space<smem>>
    %265 = vector.broadcast %264 : f32 to vector<16x128xf32>
    %266 = arith.mulf %265, %263 : vector<16x128xf32>
    %267 = arith.addf %255, %266 : vector<16x128xf32>
    %c22_97 = arith.constant 22 : index
    %268 = memref.load %arg5[%c22_97] : memref<27xf32, #tpu.memory_space<smem>>
    %269 = vector.broadcast %268 : f32 to vector<16x128xf32>
    %270 = arith.mulf %269, %262 : vector<16x128xf32>
    %271 = arith.addf %260, %270 : vector<16x128xf32>
    %c127_i32_98 = arith.constant 127 : i32
    %272 = tpu.dynamic_rotate %262 by %c127_i32_98 dim 1 : vector<16x128xf32>, i32 -> vector<16x128xf32>
    %c23_99 = arith.constant 23 : index
    %273 = memref.load %arg5[%c23_99] : memref<27xf32, #tpu.memory_space<smem>>
    %274 = vector.broadcast %273 : f32 to vector<16x128xf32>
    %275 = arith.mulf %274, %272 : vector<16x128xf32>
    %276 = arith.addf %267, %275 : vector<16x128xf32>
    %c2_100 = arith.constant 2 : index
    %c2_101 = arith.constant 2 : index
    %c0_102 = arith.constant 0 : index
    %277 = vector.load %arg8[%c2_100, %c2_101, %c0_102] : memref<3x18x128xf32, #tpu.memory_space<vmem>>, vector<1x16x128xf32>
    %278 = vector.shape_cast %277 : vector<1x16x128xf32> to vector<16x128xf32>
    %c1_i32_103 = arith.constant 1 : i32
    %279 = tpu.dynamic_rotate %278 by %c1_i32_103 dim 1 : vector<16x128xf32>, i32 -> vector<16x128xf32>
    %c24_104 = arith.constant 24 : index
    %280 = memref.load %arg5[%c24_104] : memref<27xf32, #tpu.memory_space<smem>>
    %281 = vector.broadcast %280 : f32 to vector<16x128xf32>
    %282 = arith.mulf %281, %279 : vector<16x128xf32>
    %283 = arith.addf %271, %282 : vector<16x128xf32>
    %c25_105 = arith.constant 25 : index
    %284 = memref.load %arg5[%c25_105] : memref<27xf32, #tpu.memory_space<smem>>
    %285 = vector.broadcast %284 : f32 to vector<16x128xf32>
    %286 = arith.mulf %285, %278 : vector<16x128xf32>
    %287 = arith.addf %276, %286 : vector<16x128xf32>
    %c127_i32_106 = arith.constant 127 : i32
    %288 = tpu.dynamic_rotate %278 by %c127_i32_106 dim 1 : vector<16x128xf32>, i32 -> vector<16x128xf32>
    %c26_107 = arith.constant 26 : index
    %289 = memref.load %arg5[%c26_107] : memref<27xf32, #tpu.memory_space<smem>>
    %290 = vector.broadcast %289 : f32 to vector<16x128xf32>
    %291 = arith.mulf %290, %288 : vector<16x128xf32>
    %292 = arith.addf %283, %291 : vector<16x128xf32>
    %293 = arith.addf %292, %287 : vector<16x128xf32>
    %c0_108 = arith.constant 0 : index
    %294 = memref.load %arg6[%c0_108] : memref<1xf32, #tpu.memory_space<smem>>
    %295 = vector.broadcast %294 : f32 to vector<16x128xf32>
    %296 = arith.addf %293, %295 : vector<16x128xf32>
    %cst_109 = arith.constant 5.000000e-01 : f32
    %297 = vector.broadcast %cst_109 : f32 to vector<16x128xf32>
    %298 = arith.mulf %297, %296 : vector<16x128xf32>
    %299 = math.tanh %298 : vector<16x128xf32>
    %cst_110 = arith.constant 1.000000e+00 : f32
    %300 = vector.broadcast %cst_110 : f32 to vector<16x128xf32>
    %301 = arith.addf %299, %300 : vector<16x128xf32>
    %cst_111 = arith.constant 5.000000e-01 : f32
    %302 = vector.broadcast %cst_111 : f32 to vector<16x128xf32>
    %303 = arith.mulf %302, %301 : vector<16x128xf32>
    %c0_112 = arith.constant 0 : index
    %c0_113 = arith.constant 0 : index
    %c0_114 = arith.constant 0 : index
    %304 = vector.load %arg7[%c0_112, %c0_113, %c0_114] : memref<1x16x128xf32, #tpu.memory_space<vmem>>, vector<1x16x128xf32>
    %305 = vector.shape_cast %304 : vector<1x16x128xf32> to vector<16x128xf32>
    %306 = vector.shape_cast %303 : vector<16x128xf32> to vector<1x16x128xf32>
    tpu.vector_store %arg7[%c0_112, %c0_113, %c0_114], %306 {strides = array<i32>} : memref<1x16x128xf32, #tpu.memory_space<vmem>>, vector<1x16x128xf32>,
    return
  }
  func.func @transform_0(%arg0: i32) -> (i32, i32, i32) {
    %c0_i32 = arith.constant 0 : i32
    %c0_i32_0 = arith.constant 0 : i32
    %c0_i32_1 = arith.constant 0 : i32
    return %arg0, %c0_i32, %c0_i32_0 : i32, i32, i32
  }
  func.func @transform_1(%arg0: i32) -> (i32, i32) {
    %c0_i32 = arith.constant 0 : i32
    %c0_i32_0 = arith.constant 0 : i32
    %c0_i32_1 = arith.constant 0 : i32
    return %c0_i32, %c0_i32_0 : i32, i32
  }
  func.func @transform_2(%arg0: i32) -> i32 {
    %c0_i32 = arith.constant 0 : i32
    %c0_i32_0 = arith.constant 0 : i32
    return %c0_i32 : i32
  }
  func.func @transform_3(%arg0: i32) -> i32 {
    %c0_i32 = arith.constant 0 : i32
    %c0_i32_0 = arith.constant 0 : i32
    return %c0_i32 : i32
  }
  func.func @transform_4(%arg0: i32) -> i32 {
    %c0_i32 = arith.constant 0 : i32
    %c0_i32_0 = arith.constant 0 : i32
    return %c0_i32 : i32
  }
  func.func @transform_5(%arg0: i32) -> i32 {
    %c0_i32 = arith.constant 0 : i32
    %c0_i32_0 = arith.constant 0 : i32
    return %c0_i32 : i32
  }
  func.func @transform_6(%arg0: i32) -> (i32, i32, i32) {
    %c0_i32 = arith.constant 0 : i32
    %c0_i32_0 = arith.constant 0 : i32
    %c0_i32_1 = arith.constant 0 : i32
    return %arg0, %c0_i32, %c0_i32_0 : i32, i32, i32
  }
}

</mosaic_0001>

<llo_original>
// kernel: tpu_custom_call.1
$region0: #{tpu_custom_call.1}
  #allocation0 [shape = 'u32[]', space=smem, size = 0x4, offset = 0x4, fixed_abs, tag = 'smem constant byte address 0x4 - core index']
  #allocation1 [shape = 'u32[144,128]{1,0:T(1,128)}', space=vmem, size = 0x12000, scoped, tag = 'internal scratch']
  #allocation2 [shape = 'f32[3,18,128]{2,1,0:T(8,128)}', space=vmem, size = 0x9000, scoped, tag = 'scratch operand']
  #allocation3 [shape = 'f32[1]{0:T(128)S(6)}', space=smem, size = 0x200, scoped, tag = 'scoped memory for tpu_custom_call.1']
  %s0 = inlined_call_operand.vmem [shape: f32[1,18,128], index: 0, kind: input, shape index: {}]
  %s1 = inlined_call_operand.vmem [shape: f32[1,128], index: 1, kind: input, shape index: {}]
  %s2 = inlined_call_operand.vmem [shape: f32[27], index: 2, kind: input, shape index: {}]
  %s3 = inlined_call_operand.vmem [shape: f32[3], index: 3, kind: input, shape index: {}]
  %s4 = inlined_call_operand.vmem [shape: f32[27], index: 4, kind: input, shape index: {}]
  %s5 = inlined_call_operand.<no memory space> [shape: f32[1], index: 5, kind: input, shape index: {}]
  %s6 = inlined_call_operand.hbm [shape: f32[1,16,128], index: 6, kind: output, shape index: {}]
  %s7 = sld [smem:[#allocation0]]
  $region46: #{tpu_custom_call.1} parent=0
    _
  %s9 = ssub.s32 1, %s7
  %s10 = scalar_select 0, %s9, %s7
  %11 = sst [smem:[#allocation3]] %s5
  $region1: #{tpu_custom_call.1} parent=0
    #allocation4 [shape = 'u8[512]{0}', space=smem, size = 0x200, scoped, tag = 'input window, operand 2, single buffered']
    #allocation5 [shape = 's32[1]{0}', space=sflag, size = 0x4, scoped, tag = 'scoped memory for tpu_custom_call.1']
    #allocation6 [shape = 's32[1]{0}', space=sflag, size = 0x4, scoped, tag = 'scoped memory for tpu_custom_call.1']
    #allocation7 [shape = 'u8[512]{0}', space=smem, size = 0x200, scoped, tag = 'input window, operand 3, single buffered']
    #allocation8 [shape = 's32[1]{0}', space=sflag, size = 0x4, scoped, tag = 'scoped memory for tpu_custom_call.1']
    #allocation9 [shape = 'u8[512]{0}', space=smem, size = 0x200, scoped, tag = 'input window, operand 4, single buffered']
    #allocation10 [shape = 'u8[8192]{0}', space=vmem, size = 0x2000, scoped, tag = 'output window, operand 0, single buffered']
    %12 = vsyncpa [#allocation6], 0
    %13 = vsyncpa [#allocation8], 0
    %14 = vsyncpa [#allocation5], 0
    // Predicated region
    $region2: #{tpu_custom_call.1} parent=1 // pred_check
      _
    $region3: #{tpu_custom_call.1} parent=1 // pred_check_branch
      %16 = sbr.rel (0) target = $region5
    $region4: #{tpu_custom_call.1} parent=1 // pred_region
      _
    $region5: #{tpu_custom_call.1} parent=1 // pred_fallthru
      _
    // Predicated region
    $region6: #{tpu_custom_call.1} parent=1 // pred_check
      _
    $region7: #{tpu_custom_call.1} parent=1 // pred_check_branch
      %18 = sbr.rel (0) target = $region9
    $region8: #{tpu_custom_call.1} parent=1 // pred_region
      _
    $region9: #{tpu_custom_call.1} parent=1 // pred_fallthru
      _
    // Predicated region
    $region10: #{tpu_custom_call.1} parent=1 // pred_check
      _
    $region11: #{tpu_custom_call.1} parent=1 // pred_check_branch
      %20 = sbr.rel (0) target = $region13
    $region12: #{tpu_custom_call.1} parent=1 // pred_region
      %s22 = ssub.s32 16, 16
      %23 = vsyncadd [#allocation6], %s22
      %s25 = sshll.u32 %s2, 4
      %s26 = int_to_ptr.vmem [resolvable:$true] %s25
      %28 = dma.vmem_to_smem %s26, 16, [#allocation4], [#allocation6]
    $region13: #{tpu_custom_call.1} parent=1 // pred_fallthru
      _
    // Predicated region
    $region14: #{tpu_custom_call.1} parent=1 // pred_check
      _
    $region15: #{tpu_custom_call.1} parent=1 // pred_check_branch
      %30 = sbr.rel (0) target = $region17
    $region16: #{tpu_custom_call.1} parent=1 // pred_region
      %s32 = ssub.s32 16, 16
      %33 = vsyncadd [#allocation8], %s32
      %s35 = sshll.u32 %s3, 4
      %s36 = int_to_ptr.vmem [resolvable:$true] %s35
      %38 = dma.vmem_to_smem %s36, 16, [#allocation7], [#allocation8]
    $region17: #{tpu_custom_call.1} parent=1 // pred_fallthru
      _
    // Predicated region
    $region18: #{tpu_custom_call.1} parent=1 // pred_check
      _
    $region19: #{tpu_custom_call.1} parent=1 // pred_check_branch
      %40 = sbr.rel (0) target = $region21
    $region20: #{tpu_custom_call.1} parent=1 // pred_region
      %s42 = ssub.s32 16, 16
      %43 = vsyncadd [#allocation8], %s42
      %s45 = sshll.u32 %s4, 4
      %s46 = int_to_ptr.vmem [resolvable:$true] %s45
      %48 = dma.vmem_to_smem %s46, 16, [#allocation9], [#allocation8]
    $region21: #{tpu_custom_call.1} parent=1 // pred_fallthru
      _
    // Predicated region
    $region22: #{tpu_custom_call.1} parent=1 // pred_check
      _
    $region23: #{tpu_custom_call.1} parent=1 // pred_check_branch
      %50 = sbr.rel (0) target = $region25
    $region24: #{tpu_custom_call.1} parent=1 // pred_region
      _
    $region25: #{tpu_custom_call.1} parent=1 // pred_fallthru
      _
    // Predicated region
    $region26: #{tpu_custom_call.1} parent=1 // pred_check
      _
    $region27: #{tpu_custom_call.1} parent=1 // pred_check_branch
      %52 = sbr.rel (0) target = $region29
    $region28: #{tpu_custom_call.1} parent=1 // pred_region
      %53 = dma.done [#allocation6], 16
    $region29: #{tpu_custom_call.1} parent=1 // pred_fallthru
      _
    // Predicated region
    $region30: #{tpu_custom_call.1} parent=1 // pred_check
      _
    $region31: #{tpu_custom_call.1} parent=1 // pred_check_branch
      %55 = sbr.rel (0) target = $region33
    $region32: #{tpu_custom_call.1} parent=1 // pred_region
      %56 = dma.done [#allocation8], 16
    $region33: #{tpu_custom_call.1} parent=1 // pred_fallthru
      _
    // Predicated region
    $region34: #{tpu_custom_call.1} parent=1 // pred_check
      _
    $region35: #{tpu_custom_call.1} parent=1 // pred_check_branch
      %58 = sbr.rel (0) target = $region37
    $region36: #{tpu_custom_call.1} parent=1 // pred_region
      %59 = dma.done [#allocation8], 16
    $region37: #{tpu_custom_call.1} parent=1 // pred_fallthru
      _
    %60 = sfence
    %v61 = vld [vmem:[%s1] sm:$0x1]
    %62 = vst [vmem:[#allocation2] sm:$0x1] 0.0
    %63 = vst [vmem:[#allocation2 + $0x18] sm:$0x1] 0.0
    %64 = vst [vmem:[#allocation2 + $0x30] sm:$0x1] 0.0
    %65 = vst [vmem:[#allocation2 + $0x11] sm:$0x1] 0.0
    %66 = vst [vmem:[#allocation2 + $0x29] sm:$0x1] 0.0
    %67 = vst [vmem:[#allocation2 + $0x41] sm:$0x1] 0.0
    %v68 = vld [vmem:[%s0] sm:$0xff]
    %v69 = vld [vmem:[%s0 + $0x8] sm:$0xff]
    %70 = vrot.lane.b32.xlu0 %v68, 1
    %v71 = vpop.permute.xlu0 %70
    %72 = vrot.lane.b32.xlu0 %v69, 1
    %v73 = vpop.permute.xlu0 %72
    %s74 = sld [smem:[#allocation4]]
    %v75 = vstv %s74
    %v76 = vmul.f32 %v75, %v71
    %v77 = vmul.f32 %v75, %v73
    %s78 = sld [smem:[#allocation4 + $0x9]]
    %v79 = vstv %s78
    %v80 = vmul.f32 %v79, %v71
    %v81 = vmul.f32 %v79, %v73
    %s82 = sld [smem:[#allocation4 + $0x12]]
    %v83 = vstv %s82
    %v84 = vmul.f32 %v83, %v71
    %v85 = vmul.f32 %v83, %v73
    %s86 = sld [smem:[#allocation4 + $0x1]]
    %v87 = vstv %s86
    %v88 = vmul.f32 %v87, %v68
    %v89 = vmul.f32 %v87, %v69
    %v90 = vadd.f32 %v76, %v88
    %v91 = vadd.f32 %v77, %v89
    %s92 = sld [smem:[#allocation4 + $0xa]]
    %v93 = vstv %s92
    %v94 = vmul.f32 %v93, %v68
    %v95 = vmul.f32 %v93, %v69
    %v96 = vadd.f32 %v80, %v94
    %v97 = vadd.f32 %v81, %v95
    %s98 = sld [smem:[#allocation4 + $0x13]]
    %v99 = vstv %s98
    %v100 = vmul.f32 %v99, %v68
    %v101 = vmul.f32 %v99, %v69
    %v102 = vadd.f32 %v84, %v100
    %v103 = vadd.f32 %v85, %v101
    %104 = vrot.lane.b32.xlu0 %v68, 127
    %v105 = vpop.permute.xlu0 %104
    %106 = vrot.lane.b32.xlu0 %v69, 127
    %v107 = vpop.permute.xlu0 %106
    %s108 = sld [smem:[#allocation4 + $0x2]]
    %v109 = vstv %s108
    %v110 = vmul.f32 %v109, %v105
    %v111 = vmul.f32 %v109, %v107
    %v112 = vadd.f32 %v90, %v110
    %v113 = vadd.f32 %v91, %v111
    %s114 = sld [smem:[#allocation4 + $0xb]]
    %v115 = vstv %s114
    %v116 = vmul.f32 %v115, %v105
    %v117 = vmul.f32 %v115, %v107
    %v118 = vadd.f32 %v96, %v116
    %v119 = vadd.f32 %v97, %v117
    %s120 = sld [smem:[#allocation4 + $0x14]]
    %v121 = vstv %s120
    %v122 = vmul.f32 %v121, %v105
    %v123 = vmul.f32 %v121, %v107
    %v124 = vadd.f32 %v102, %v122
    %v125 = vadd.f32 %v103, %v123
    %v126 = vld [vmem:[%s0 + $0x1] sm:$0xff]
    %v127 = vld [vmem:[%s0 + $0x9] sm:$0xff]
    %128 = vrot.lane.b32.xlu0 %v126, 1
    %v129 = vpop.permute.xlu0 %128
    %130 = vrot.lane.b32.xlu0 %v127, 1
    %v131 = vpop.permute.xlu0 %130
    %s132 = sld [smem:[#allocation4 + $0x3]]
    %v133 = vstv %s132
    %v134 = vmul.f32 %v133, %v129
    %v135 = vmul.f32 %v133, %v131
    %v136 = vadd.f32 %v112, %v134
    %v137 = vadd.f32 %v113, %v135
    %s138 = sld [smem:[#allocation4 + $0xc]]
    %v139 = vstv %s138
    %v140 = vmul.f32 %v139, %v129
    %v141 = vmul.f32 %v139, %v131
    %v142 = vadd.f32 %v118, %v140
    %v143 = vadd.f32 %v119, %v141
    %s144 = sld [smem:[#allocation4 + $0x15]]
    %v145 = vstv %s144
    %v146 = vmul.f32 %v145, %v129
    %v147 = vmul.f32 %v145, %v131
    %v148 = vadd.f32 %v124, %v146
    %v149 = vadd.f32 %v125, %v147
    %s150 = sld [smem:[#allocation4 + $0x4]]
    %v151 = vstv %s150
    %v152 = vmul.f32 %v151, %v126
    %v153 = vmul.f32 %v151, %v127
    %v154 = vadd.f32 %v136, %v152
    %v155 = vadd.f32 %v137, %v153
    %s156 = sld [smem:[#allocation4 + $0xd]]
    %v157 = vstv %s156
    %v158 = vmul.f32 %v157, %v126
    %v159 = vmul.f32 %v157, %v127
    %v160 = vadd.f32 %v142, %v158
    %v161 = vadd.f32 %v143, %v159
    %s162 = sld [smem:[#allocation4 + $0x16]]
    %v163 = vstv %s162
    %v164 = vmul.f32 %v163, %v126
    %v165 = vmul.f32 %v163, %v127
    %v166 = vadd.f32 %v148, %v164
    %v167 = vadd.f32 %v149, %v165
    %168 = vrot.lane.b32.xlu0 %v126, 127
    %v169 = vpop.permute.xlu0 %168
    %170 = vrot.lane.b32.xlu0 %v127, 127
    %v171 = vpop.permute.xlu0 %170
    %s172 = sld [smem:[#allocation4 + $0x5]]
    %v173 = vstv %s172
    %v174 = vmul.f32 %v173, %v169
    %v175 = vmul.f32 %v173, %v171
    %v176 = vadd.f32 %v154, %v174
    %v177 = vadd.f32 %v155, %v175
    %s178 = sld [smem:[#allocation4 + $0xe]]
    %v179 = vstv %s178
    %v180 = vmul.f32 %v179, %v169
    %v181 = vmul.f32 %v179, %v171
    %v182 = vadd.f32 %v160, %v180
    %v183 = vadd.f32 %v161, %v181
    %s184 = sld [smem:[#allocation4 + $0x17]]
    %v185 = vstv %s184
    %v186 = vmul.f32 %v185, %v169
    %v187 = vmul.f32 %v185, %v171
    %v188 = vadd.f32 %v166, %v186
    %v189 = vadd.f32 %v167, %v187
    %v190 = vld [vmem:[%s0 + $0x2] sm:$0xff]
    %v191 = vld [vmem:[%s0 + $0xa] sm:$0xff]
    %192 = vrot.lane.b32.xlu0 %v190, 1
    %v193 = vpop.permute.xlu0 %192
    %194 = vrot.lane.b32.xlu0 %v191, 1
    %v195 = vpop.permute.xlu0 %194
    %s196 = sld [smem:[#allocation4 + $0x6]]
    %v197 = vstv %s196
    %v198 = vmul.f32 %v197, %v193
    %v199 = vmul.f32 %v197, %v195
    %v200 = vadd.f32 %v176, %v198
    %v201 = vadd.f32 %v177, %v199
    %s202 = sld [smem:[#allocation4 + $0xf]]
    %v203 = vstv %s202
    %v204 = vmul.f32 %v203, %v193
    %v205 = vmul.f32 %v203, %v195
    %v206 = vadd.f32 %v182, %v204
    %v207 = vadd.f32 %v183, %v205
    %s208 = sld [smem:[#allocation4 + $0x18]]
    %v209 = vstv %s208
    %v210 = vmul.f32 %v209, %v193
    %v211 = vmul.f32 %v209, %v195
    %v212 = vadd.f32 %v188, %v210
    %v213 = vadd.f32 %v189, %v211
    %s214 = sld [smem:[#allocation4 + $0x7]]
    %v215 = vstv %s214
    %v216 = vmul.f32 %v215, %v190
    %v217 = vmul.f32 %v215, %v191
    %v218 = vadd.f32 %v200, %v216
    %v219 = vadd.f32 %v201, %v217
    %s220 = sld [smem:[#allocation4 + $0x10]]
    %v221 = vstv %s220
    %v222 = vmul.f32 %v221, %v190
    %v223 = vmul.f32 %v221, %v191
    %v224 = vadd.f32 %v206, %v222
    %v225 = vadd.f32 %v207, %v223
    %s226 = sld [smem:[#allocation4 + $0x19]]
    %v227 = vstv %s226
    %v228 = vmul.f32 %v227, %v190
    %v229 = vmul.f32 %v227, %v191
    %v230 = vadd.f32 %v212, %v228
    %v231 = vadd.f32 %v213, %v229
    %232 = vrot.lane.b32.xlu0 %v190, 127
    %v233 = vpop.permute.xlu0 %232
    %234 = vrot.lane.b32.xlu0 %v191, 127
    %v235 = vpop.permute.xlu0 %234
    %s236 = sld [smem:[#allocation4 + $0x8]]
    %v237 = vstv %s236
    %v238 = vmul.f32 %v237, %v233
    %v239 = vmul.f32 %v237, %v235
    %v240 = vadd.f32 %v218, %v238
    %v241 = vadd.f32 %v219, %v239
    %s242 = sld [smem:[#allocation4 + $0x11]]
    %v243 = vstv %s242
    %v244 = vmul.f32 %v243, %v233
    %v245 = vmul.f32 %v243, %v235
    %v246 = vadd.f32 %v224, %v244
    %v247 = vadd.f32 %v225, %v245
    %s248 = sld [smem:[#allocation4 + $0x1a]]
    %v249 = vstv %s248
    %v250 = vmul.f32 %v249, %v233
    %v251 = vmul.f32 %v249, %v235
    %v252 = vadd.f32 %v230, %v250
    %v253 = vadd.f32 %v231, %v251
    %s254 = sld [smem:[#allocation7]]
    %v255 = vstv %s254
    %v256 = vadd.f32 %v240, %v255
    %v257 = vadd.f32 %v241, %v255
    %v258 = vmax.f32 %v256, 0.0
    %v259 = vmax.f32 %v257, 0.0
    %v261 = vlaneseq
    %v262 = vshrl.u32 %v261, 7
    %v263 = vsub.s32 0, %v262
    %v264 = vrot.slane %v61, %v263
    %v266 = vmul.f32 %v258, %v264
    %v267 = vmul.f32 %v259, %v264
    %268 = vst [vmem:[#allocation2 + $0x1] sm:$0xff] %v266
    %269 = vst [vmem:[#allocation2 + $0x9] sm:$0xff] %v267
    %s270 = sld [smem:[#allocation7 + $0x1]]
    %v271 = vstv %s270
    %v272 = vadd.f32 %v246, %v271
    %v273 = vadd.f32 %v247, %v271
    %v274 = vmax.f32 %v272, 0.0
    %v275 = vmax.f32 %v273, 0.0
    %v276 = vmul.f32 %v274, %v264
    %v277 = vmul.f32 %v275, %v264
    %s278 = scalar_lea.vmem [#allocation2], 24
    %279 = vst [vmem:[%s278 + $0x1] sm:$0xff] %v276
    %280 = vst [vmem:[%s278 + $0x9] sm:$0xff] %v277
    %s281 = sld [smem:[#allocation7 + $0x2]]
    %v282 = vstv %s281
    %v283 = vadd.f32 %v252, %v282
    %v284 = vadd.f32 %v253, %v282
    %v285 = vmax.f32 %v283, 0.0
    %v286 = vmax.f32 %v284, 0.0
    %v287 = vmul.f32 %v285, %v264
    %v288 = vmul.f32 %v286, %v264
    %s289 = scalar_lea.vmem [#allocation2], 48
    %290 = vst [vmem:[%s289 + $0x1] sm:$0xff] %v287
    %291 = vst [vmem:[%s289 + $0x9] sm:$0xff] %v288
    %v292 = vld [vmem:[#allocation2] sm:$0xff]
    %v293 = vld [vmem:[#allocation2 + $0x8] sm:$0xff]
    %294 = vrot.lane.b32.xlu0 %v292, 1
    %v295 = vpop.permute.xlu0 %294
    %296 = vrot.lane.b32.xlu0 %v293, 1
    %v297 = vpop.permute.xlu0 %296
    %s298 = sld [smem:[#allocation9]]
    %v299 = vstv %s298
    %v300 = vmul.f32 %v299, %v295
    %v301 = vmul.f32 %v299, %v297
    %s302 = sld [smem:[#allocation9 + $0x1]]
    %v303 = vstv %s302
    %v304 = vmul.f32 %v303, %v292
    %v305 = vmul.f32 %v303, %v293
    %306 = vrot.lane.b32.xlu0 %v292, 127
    %v307 = vpop.permute.xlu0 %306
    %308 = vrot.lane.b32.xlu0 %v293, 127
    %v309 = vpop.permute.xlu0 %308
    %s310 = sld [smem:[#allocation9 + $0x2]]
    %v311 = vstv %s310
    %v312 = vmul.f32 %v311, %v307
    %v313 = vmul.f32 %v311, %v309
    %v314 = vadd.f32 %v300, %v312
    %v315 = vadd.f32 %v301, %v313
    %v316 = vld [vmem:[#allocation2 + $0x1] sm:$0xff]
    %v317 = vld [vmem:[#allocation2 + $0x9] sm:$0xff]
    %318 = vrot.lane.b32.xlu0 %v316, 1
    %v319 = vpop.permute.xlu0 %318
    %320 = vrot.lane.b32.xlu0 %v317, 1
    %v321 = vpop.permute.xlu0 %320
    %s322 = sld [smem:[#allocation9 + $0x3]]
    %v323 = vstv %s322
    %v324 = vmul.f32 %v323, %v319
    %v325 = vmul.f32 %v323, %v321
    %v326 = vadd.f32 %v304, %v324
    %v327 = vadd.f32 %v305, %v325
    %s328 = sld [smem:[#allocation9 + $0x4]]
    %v329 = vstv %s328
    %v330 = vmul.f32 %v329, %v316
    %v331 = vmul.f32 %v329, %v317
    %v332 = vadd.f32 %v314, %v330
    %v333 = vadd.f32 %v315, %v331
    %334 = vrot.lane.b32.xlu0 %v316, 127
    %v335 = vpop.permute.xlu0 %334
    %336 = vrot.lane.b32.xlu0 %v317, 127
    %v337 = vpop.permute.xlu0 %336
    %s338 = sld [smem:[#allocation9 + $0x5]]
    %v339 = vstv %s338
    %v340 = vmul.f32 %v339, %v335
    %v341 = vmul.f32 %v339, %v337
    %v342 = vadd.f32 %v326, %v340
    %v343 = vadd.f32 %v327, %v341
    %v344 = vld [vmem:[#allocation2 + $0x2] sm:$0xff]
    %v345 = vld [vmem:[#allocation2 + $0xa] sm:$0xff]
    %346 = vrot.lane.b32.xlu0 %v344, 1
    %v347 = vpop.permute.xlu0 %346
    %348 = vrot.lane.b32.xlu0 %v345, 1
    %v349 = vpop.permute.xlu0 %348
    %s350 = sld [smem:[#allocation9 + $0x6]]
    %v351 = vstv %s350
    %v352 = vmul.f32 %v351, %v347
    %v353 = vmul.f32 %v351, %v349
    %v354 = vadd.f32 %v332, %v352
    %v355 = vadd.f32 %v333, %v353
    %s356 = sld [smem:[#allocation9 + $0x7]]
    %v357 = vstv %s356
    %v358 = vmul.f32 %v357, %v344
    %v359 = vmul.f32 %v357, %v345
    %v360 = vadd.f32 %v342, %v358
    %v361 = vadd.f32 %v343, %v359
    %362 = vrot.lane.b32.xlu0 %v344, 127
    %v363 = vpop.permute.xlu0 %362
    %364 = vrot.lane.b32.xlu0 %v345, 127
    %v365 = vpop.permute.xlu0 %364
    %s366 = sld [smem:[#allocation9 + $0x8]]
    %v367 = vstv %s366
    %v368 = vmul.f32 %v367, %v363
    %v369 = vmul.f32 %v367, %v365
    %v370 = vadd.f32 %v354, %v368
    %v371 = vadd.f32 %v355, %v369
    %v372 = vld [vmem:[%s278] sm:$0xff]
    %v373 = vld [vmem:[%s278 + $0x8] sm:$0xff]
    %374 = vrot.lane.b32.xlu0 %v372, 1
    %v375 = vpop.permute.xlu0 %374
    %376 = vrot.lane.b32.xlu0 %v373, 1
    %v377 = vpop.permute.xlu0 %376
    %s378 = sld [smem:[#allocation9 + $0x9]]
    %v379 = vstv %s378
    %v380 = vmul.f32 %v379, %v375
    %v381 = vmul.f32 %v379, %v377
    %v382 = vadd.f32 %v360, %v380
    %v383 = vadd.f32 %v361, %v381
    %s384 = sld [smem:[#allocation9 + $0xa]]
    %v385 = vstv %s384
    %v386 = vmul.f32 %v385, %v372
    %v387 = vmul.f32 %v385, %v373
    %v388 = vadd.f32 %v370, %v386
    %v389 = vadd.f32 %v371, %v387
    %390 = vrot.lane.b32.xlu0 %v372, 127
    %v391 = vpop.permute.xlu0 %390
    %392 = vrot.lane.b32.xlu0 %v373, 127
    %v393 = vpop.permute.xlu0 %392
    %s394 = sld [smem:[#allocation9 + $0xb]]
    %v395 = vstv %s394
    %v396 = vmul.f32 %v395, %v391
    %v397 = vmul.f32 %v395, %v393
    %v398 = vadd.f32 %v382, %v396
    %v399 = vadd.f32 %v383, %v397
    %v400 = vld [vmem:[%s278 + $0x1] sm:$0xff]
    %v401 = vld [vmem:[%s278 + $0x9] sm:$0xff]
    %402 = vrot.lane.b32.xlu0 %v400, 1
    %v403 = vpop.permute.xlu0 %402
    %404 = vrot.lane.b32.xlu0 %v401, 1
    %v405 = vpop.permute.xlu0 %404
    %s406 = sld [smem:[#allocation9 + $0xc]]
    %v407 = vstv %s406
    %v408 = vmul.f32 %v407, %v403
    %v409 = vmul.f32 %v407, %v405
    %v410 = vadd.f32 %v388, %v408
    %v411 = vadd.f32 %v389, %v409
    %s412 = sld [smem:[#allocation9 + $0xd]]
    %v413 = vstv %s412
    %v414 = vmul.f32 %v413, %v400
    %v415 = vmul.f32 %v413, %v401
    %v416 = vadd.f32 %v398, %v414
    %v417 = vadd.f32 %v399, %v415
    %418 = vrot.lane.b32.xlu0 %v400, 127
    %v419 = vpop.permute.xlu0 %418
    %420 = vrot.lane.b32.xlu0 %v401, 127
    %v421 = vpop.permute.xlu0 %420
    %s422 = sld [smem:[#allocation9 + $0xe]]
    %v423 = vstv %s422
    %v424 = vmul.f32 %v423, %v419
    %v425 = vmul.f32 %v423, %v421
    %v426 = vadd.f32 %v410, %v424
    %v427 = vadd.f32 %v411, %v425
    %v428 = vld [vmem:[%s278 + $0x2] sm:$0xff]
    %v429 = vld [vmem:[%s278 + $0xa] sm:$0xff]
    %430 = vrot.lane.b32.xlu0 %v428, 1
    %v431 = vpop.permute.xlu0 %430
    %432 = vrot.lane.b32.xlu0 %v429, 1
    %v433 = vpop.permute.xlu0 %432
    %s434 = sld [smem:[#allocation9 + $0xf]]
    %v435 = vstv %s434
    %v436 = vmul.f32 %v435, %v431
    %v437 = vmul.f32 %v435, %v433
    %v438 = vadd.f32 %v416, %v436
    %v439 = vadd.f32 %v417, %v437
    %s440 = sld [smem:[#allocation9 + $0x10]]
    %v441 = vstv %s440
    %v442 = vmul.f32 %v441, %v428
    %v443 = vmul.f32 %v441, %v429
    %v444 = vadd.f32 %v426, %v442
    %v445 = vadd.f32 %v427, %v443
    %446 = vrot.lane.b32.xlu0 %v428, 127
    %v447 = vpop.permute.xlu0 %446
    %448 = vrot.lane.b32.xlu0 %v429, 127
    %v449 = vpop.permute.xlu0 %448
    %s450 = sld [smem:[#allocation9 + $0x11]]
    %v451 = vstv %s450
    %v452 = vmul.f32 %v451, %v447
    %v453 = vmul.f32 %v451, %v449
    %v454 = vadd.f32 %v438, %v452
    %v455 = vadd.f32 %v439, %v453
    %v456 = vld [vmem:[%s289] sm:$0xff]
    %v457 = vld [vmem:[%s289 + $0x8] sm:$0xff]
    %458 = vrot.lane.b32.xlu0 %v456, 1
    %v459 = vpop.permute.xlu0 %458
    %460 = vrot.lane.b32.xlu0 %v457, 1
    %v461 = vpop.permute.xlu0 %460
    %s462 = sld [smem:[#allocation9 + $0x12]]
    %v463 = vstv %s462
    %v464 = vmul.f32 %v463, %v459
    %v465 = vmul.f32 %v463, %v461
    %v466 = vadd.f32 %v444, %v464
    %v467 = vadd.f32 %v445, %v465
    %s468 = sld [smem:[#allocation9 + $0x13]]
    %v469 = vstv %s468
    %v470 = vmul.f32 %v469, %v456
    %v471 = vmul.f32 %v469, %v457
    %v472 = vadd.f32 %v454, %v470
    %v473 = vadd.f32 %v455, %v471
    %474 = vrot.lane.b32.xlu0 %v456, 127
    %v475 = vpop.permute.xlu0 %474
    %476 = vrot.lane.b32.xlu0 %v457, 127
    %v477 = vpop.permute.xlu0 %476
    %s478 = sld [smem:[#allocation9 + $0x14]]
    %v479 = vstv %s478
    %v480 = vmul.f32 %v479, %v475
    %v481 = vmul.f32 %v479, %v477
    %v482 = vadd.f32 %v466, %v480
    %v483 = vadd.f32 %v467, %v481
    %v484 = vld [vmem:[%s289 + $0x1] sm:$0xff]
    %v485 = vld [vmem:[%s289 + $0x9] sm:$0xff]
    %486 = vrot.lane.b32.xlu0 %v484, 1
    %v487 = vpop.permute.xlu0 %486
    %488 = vrot.lane.b32.xlu0 %v485, 1
    %v489 = vpop.permute.xlu0 %488
    %s490 = sld [smem:[#allocation9 + $0x15]]
    %v491 = vstv %s490
    %v492 = vmul.f32 %v491, %v487
    %v493 = vmul.f32 %v491, %v489
    %v494 = vadd.f32 %v472, %v492
    %v495 = vadd.f32 %v473, %v493
    %s496 = sld [smem:[#allocation9 + $0x16]]
    %v497 = vstv %s496
    %v498 = vmul.f32 %v497, %v484
    %v499 = vmul.f32 %v497, %v485
    %v500 = vadd.f32 %v482, %v498
    %v501 = vadd.f32 %v483, %v499
    %502 = vrot.lane.b32.xlu0 %v484, 127
    %v503 = vpop.permute.xlu0 %502
    %504 = vrot.lane.b32.xlu0 %v485, 127
    %v505 = vpop.permute.xlu0 %504
    %s506 = sld [smem:[#allocation9 + $0x17]]
    %v507 = vstv %s506
    %v508 = vmul.f32 %v507, %v503
    %v509 = vmul.f32 %v507, %v505
    %v510 = vadd.f32 %v494, %v508
    %v511 = vadd.f32 %v495, %v509
    %v512 = vld [vmem:[%s289 + $0x2] sm:$0xff]
    %v513 = vld [vmem:[%s289 + $0xa] sm:$0xff]
    %514 = vrot.lane.b32.xlu0 %v512, 1
    %v515 = vpop.permute.xlu0 %514
    %516 = vrot.lane.b32.xlu0 %v513, 1
    %v517 = vpop.permute.xlu0 %516
    %s518 = sld [smem:[#allocation9 + $0x18]]
    %v519 = vstv %s518
    %v520 = vmul.f32 %v519, %v515
    %v521 = vmul.f32 %v519, %v517
    %v522 = vadd.f32 %v500, %v520
    %v523 = vadd.f32 %v501, %v521
    %s524 = sld [smem:[#allocation9 + $0x19]]
    %v525 = vstv %s524
    %v526 = vmul.f32 %v525, %v512
    %v527 = vmul.f32 %v525, %v513
    %v528 = vadd.f32 %v510, %v526
    %v529 = vadd.f32 %v511, %v527
    %530 = vrot.lane.b32.xlu0 %v512, 127
    %v531 = vpop.permute.xlu0 %530
    %532 = vrot.lane.b32.xlu0 %v513, 127
    %v533 = vpop.permute.xlu0 %532
    %s534 = sld [smem:[#allocation9 + $0x1a]]
    %v535 = vstv %s534
    %v536 = vmul.f32 %v535, %v531
    %v537 = vmul.f32 %v535, %v533
    %v538 = vadd.f32 %v522, %v536
    %v539 = vadd.f32 %v523, %v537
    %v540 = vadd.f32 %v538, %v528
    %v541 = vadd.f32 %v539, %v529
    %s542 = sld [smem:[#allocation3]]
    %v543 = vstv %s542
    %v544 = vadd.f32 %v540, %v543
    %v545 = vadd.f32 %v541, %v543
    %v546 = vmul.f32 %v544, 0.5
    %v547 = vmul.f32 %v545, 0.5
    %v548 = vtanh.pop %v546
    %v549 = vtanh.pop %v547
    %v550 = vadd.f32 %v548, 1.0
    %v551 = vadd.f32 %v549, 1.0
    %v552 = vmul.f32 %v550, 0.5
    %v553 = vmul.f32 %v551, 0.5
    %554 = vst [vmem:[#allocation10] sm:$0xff] %v552
    %555 = vst [vmem:[#allocation10 + $0x8] sm:$0xff] %v553
    // Predicated region
    $region38: #{tpu_custom_call.1} parent=1 // pred_check
      _
    $region39: #{tpu_custom_call.1} parent=1 // pred_check_branch
      %557 = sbr.rel (0) target = $region41
    $region40: #{tpu_custom_call.1} parent=1 // pred_region
      %s559 = ssub.s32 256, 256
      %560 = vsyncadd [#allocation5], %s559
      %s561 = sshll.u32 [#allocation10], 4
      %s562 = int_to_ptr.vmem [resolvable:$true] %s561
      %567 = dma.vmem_to_hbm [thread:$0]  %s562, 256, %s6, [#allocation5], 128, 128, 8
    $region41: #{tpu_custom_call.1} parent=1 // pred_fallthru
      _
    // Predicated region
    $region42: #{tpu_custom_call.1} parent=1 // pred_check
      _
    $region43: #{tpu_custom_call.1} parent=1 // pred_check_branch
      %569 = sbr.rel (0) target = $region45
    $region44: #{tpu_custom_call.1} parent=1 // pred_region
      %570 = dma.done [#allocation5], 256
    $region45: #{tpu_custom_call.1} parent=1 // pred_fallthru
      _
    %571 = vsyncpa [#allocation5], 1
    %572 = vsyncpa [#allocation6], 1
    %573 = vsyncpa [#allocation8], 1

</llo_original>
